<compile_context>
chip_gen: v6e
topology: v6e:2x2x1
jax: 0.10.0
libtpu: 0.0.40
codegen_flags: <defaults>
</compile_context>

<pallas_src>
import functools

import jax
import jax.numpy as jnp
from jax.experimental import pallas as pl
from jax.experimental.pallas import tpu as pltpu


def _round_up(x, m):
    return ((x + m - 1) // m) * m


def _node_attention_kernel(h_ref, adj_ref, g_ref, a1_ref, e2_ref, out_ref, *,
                           gamma, leaky_slope):
    """Processes one (block_n, Mpad) row-slab of the node-level attention."""
    h = h_ref[...].astype(jnp.float32)        # (TN, Dp)  VPU math in f32
    adj = adj_ref[...].astype(jnp.float32)    # (TN, Mp)  narrow in HBM, upcast here
    a1t = a1_ref[...]                         # (1, Dp)   f32
    e2t = e2_ref[...]                         # (1, Mp)   f32, hoisted out of the loop

    # e1 = h @ a1  (lane-wise multiply + cross-lane reduce; keeps the MXU free)
    e1 = jnp.sum(h * a1t, axis=1, keepdims=True)              # (TN, 1)

    # e = leakyrelu(e1 + e2^T, 0.2)
    e = e1 + e2t                                               # (TN, Mp)
    e = jnp.where(e > 0, e, leaky_slope * e)

    # masked row-wise softmax (padded / non-edge columns get -9e15)
    logits = jnp.where(adj > 0, e, jnp.float32(-9.0e15))
    m = jnp.max(logits, axis=1, keepdims=True)                 # (TN, 1)
    p = jnp.exp(logits - m)                                    # (TN, Mp)
    denom = jnp.sum(p, axis=1, keepdims=True)                  # (TN, 1)
    row_sum = jnp.sum(adj, axis=1, keepdims=True)              # (TN, 1) degree

    # Degree rescale, softmax normalization and gamma folded into a single
    # (TN,1) factor; approximate reciprocal runs on the idle EUP slot.
    scale = (gamma * row_sum) * pl.reciprocal(denom, approx=True)
    attention = p * scale + adj * (1.0 - gamma)                # (TN, Mp)

    g = g_ref[...]                                             # (Mp, Dp) native dtype
    # MXU matmul: bf16 operands when h/g are bf16, f32 accumulation always.
    out_ref[...] = jnp.dot(attention.astype(g.dtype), g,
                           preferred_element_type=jnp.float32)


def _pick_block_n(n, m_pad, d_pad, h_itemsize, adj_itemsize, g_itemsize,
                  vmem_budget_bytes):
    """Largest row tile whose double-buffered footprint fits the VMEM budget."""
    resident = m_pad * d_pad * g_itemsize + 4 * (d_pad + m_pad)   # g + a1t + e2t
    tn = 512
    while tn > 8:
        io = 2 * tn * (d_pad * h_itemsize + m_pad * adj_itemsize + d_pad * 4)
        tmp = 4 * tn * m_pad * 4      # in-kernel f32 (TN, Mp) temporaries
        if io + tmp + resident <= vmem_budget_bytes:
            break
        tn //= 2
    return max(8, min(tn, _round_up(n, 8)))


def attention_node_level(h, g, adj, a1, a2, gamma=0.1, *, block_n=None):
    """HGAT node-level attention forward.

    h: (N, D) type-I features, g: (M, D) type-II features, adj: (N, M) dense
    adjacency (any real dtype, 0 == no edge), a1/a2: (D, 1). Returns (N, D) f32.
    """
    N, D = h.shape
    M, D2 = g.shape
    assert D == D2 and adj.shape == (N, M)
    assert a1.shape == (D, 1) and a2.shape == (D, 1)

    f32 = jnp.float32
    d_pad = _round_up(D, 128)          # lane-dense feature dim
    m_pad = _round_up(M, 128)          # lane-dense neighbor dim
    vmem_limit = 40 * 1024 * 1024      # explicit scoped limit (v7x-safe)

    if block_n is None:
        block_n = _pick_block_n(
            N, m_pad, d_pad,
            jnp.dtype(h.dtype).itemsize,
            jnp.dtype(adj.dtype).itemsize,
            jnp.dtype(g.dtype).itemsize,
            vmem_budget_bytes=28 * 1024 * 1024)
    n_pad = _round_up(N, block_n)

    # Hoist e2 = g @ a2 out of the per-row-tile loop (shared by every row).
    e2t = jnp.dot(g.astype(f32), a2.astype(f32)).reshape(1, M)
    a1t = a1.astype(f32).reshape(1, D)

    # Zero-pad to aligned shapes; padded columns are masked by adj == 0 and
    # padded rows produce zeros (sliced off at the end).
    h_p = jnp.zeros((n_pad, d_pad), h.dtype).at[:N, :D].set(h)
    g_p = jnp.zeros((m_pad, d_pad), g.dtype).at[:M, :D].set(g)
    adj_p = jnp.zeros((n_pad, m_pad), adj.dtype).at[:N, :M].set(adj)
    a1t_p = jnp.zeros((1, d_pad), f32).at[:, :D].set(a1t)
    e2t_p = jnp.zeros((1, m_pad), f32).at[:, :M].set(e2t)

    kernel = functools.partial(_node_attention_kernel,
                               gamma=float(gamma), leaky_slope=0.2)

    cost = pl.CostEstimate(
        flops=2 * n_pad * m_pad * d_pad + 10 * n_pad * m_pad,
        transcendentals=n_pad * m_pad + n_pad,
        bytes_accessed=(h_p.size * h_p.dtype.itemsize
                        + adj_p.size * adj_p.dtype.itemsize
                        + g_p.size * g_p.dtype.itemsize
                        + n_pad * d_pad * 4),
    )

    out = pl.pallas_call(
        kernel,
        out_shape=jax.ShapeDtypeStruct((n_pad, d_pad), f32),
        grid_spec=pltpu.PrefetchScalarGridSpec(
            num_scalar_prefetch=0,
            grid=(n_pad // block_n,),
            in_specs=[
                pl.BlockSpec((block_n, d_pad), lambda i: (i, 0)),   # h row tile
                pl.BlockSpec((block_n, m_pad), lambda i: (i, 0)),   # adj row tile
                pl.BlockSpec((m_pad, d_pad), lambda i: (0, 0)),     # g (resident)
                pl.BlockSpec((1, d_pad), lambda i: (0, 0)),         # a1^T (resident)
                pl.BlockSpec((1, m_pad), lambda i: (0, 0)),         # e2^T (resident)
            ],
            out_specs=pl.BlockSpec((block_n, d_pad), lambda i: (i, 0)),
        ),
        compiler_params=pltpu.CompilerParams(
            dimension_semantics=("parallel",),   # row tiles shard across v7x's 2 TCs
            vmem_limit_bytes=vmem_limit,
        ),
        cost_estimate=cost,
    )(h_p, adj_p, g_p, a1t_p, e2t_p)

    return out[:N, :D]


def _reference(h, g, adj, a1, a2, gamma=0.1):
    """Pure-JAX reference mirroring the PyTorch forward (dense-adj branch)."""
    e1 = h @ a1                                            # (N, 1)
    e2 = g @ a2                                            # (M, 1)
    e = e1 + e2.T
    e = jnp.where(e > 0, e, 0.2 * e)
    zero_vec = -9.0e15 * jnp.ones_like(e)
    att = jnp.where(adj > 0, e, zero_vec)
    att = jax.nn.softmax(att, axis=1)
    att = att * adj.sum(1, keepdims=True)
    att = att * gamma + adj * (1.0 - gamma)
    return att @ g


if __name__ == "__main__":
    key = jax.random.PRNGKey(0)
    k_h, k_g, k_adj, k_a1, k_a2 = jax.random.split(key, 5)

    # Small shapes, deliberately not lane/sublane aligned to exercise padding.
    N, M, D = 12, 24, 40
    gamma = 0.1

    h = jax.random.normal(k_h, (N, D), dtype=jnp.float32)
    g = jax.random.normal(k_g, (M, D), dtype=jnp.float32)
    # adj kept narrow in HBM (bf16 represents 0/1 exactly); upcast in-kernel.
    adj = (jax.random.uniform(k_adj, (N, M)) > 0.5).astype(jnp.bfloat16)

    # xavier_normal_ with gain=1.414 on shape (D, 1): std = gain * sqrt(2/(D+1))
    std = 1.414 * (2.0 / (D + 1)) ** 0.5
    a1 = std * jax.random.normal(k_a1, (D, 1), dtype=jnp.float32)
    a2 = std * jax.random.normal(k_a2, (D, 1), dtype=jnp.float32)

    adj_f32 = adj.astype(jnp.float32)

    # --- f32 feature path ---
    out = attention_node_level(h, g, adj, a1, a2, gamma)
    out = jax.block_until_ready(out)
    ref = _reference(h, g, adj_f32, a1, a2, gamma)
    assert out.shape == (N, D)
    assert jnp.allclose(out, ref, atol=5e-3, rtol=5e-3), "f32 path mismatch"

    # --- bf16 feature path (halved h/g HBM streams, bf16 MXU matmul) ---
    h_bf = h.astype(jnp.bfloat16)
    g_bf = g.astype(jnp.bfloat16)
    out_bf = attention_node_level(h_bf, g_bf, adj, a1, a2, gamma)
    out_bf = jax.block_until_ready(out_bf)
    ref_bf = _reference(h_bf.astype(jnp.float32), g_bf.astype(jnp.float32),
                        adj_f32, a1, a2, gamma)
    assert out_bf.shape == (N, D)
    assert jnp.allclose(out_bf, ref_bf, atol=8e-2, rtol=5e-2), "bf16 path mismatch"

    print("KERNEL_OK")
</pallas_src>

<mosaic_0001>
module attributes {stable_mosaic.version = 11 : i64} {
  func.func @_node_attention_kernel(%arg0: i32, %arg1: memref<16x128xf32, #tpu.memory_space<vmem>>, %arg2: memref<16x128xbf16, #tpu.memory_space<vmem>>, %arg3: memref<128x128xf32, #tpu.memory_space<vmem>>, %arg4: memref<1x128xf32, #tpu.memory_space<vmem>>, %arg5: memref<1x128xf32, #tpu.memory_space<vmem>>, %arg6: memref<16x128xf32, #tpu.memory_space<vmem>>) attributes {dimension_semantics = [#tpu.dimension_semantics<parallel>], iteration_bounds = array<i64: 1>, scalar_prefetch = 0 : i64, scratch_operands = 0 : i64, tpu.core_type = #tpu.core_type<tc>, window_params = [{transform_indices = @transform_0, window_bounds = array<i64: 16, 128>}, {transform_indices = @transform_1, window_bounds = array<i64: 16, 128>}, {pipeline_mode = #tpu.pipeline_mode<synchronous>, transform_indices = @transform_2, window_bounds = array<i64: 128, 128>}, {pipeline_mode = #tpu.pipeline_mode<synchronous>, transform_indices = @transform_3, window_bounds = array<i64: 1, 128>}, {pipeline_mode = #tpu.pipeline_mode<synchronous>, transform_indices = @transform_4, window_bounds = array<i64: 1, 128>}, {transform_indices = @transform_5, window_bounds = array<i64: 16, 128>}]} {
    %c0 = arith.constant 0 : index
    %c0_0 = arith.constant 0 : index
    %0 = vector.load %arg1[%c0, %c0_0] : memref<16x128xf32, #tpu.memory_space<vmem>>, vector<16x128xf32>
    %c0_1 = arith.constant 0 : index
    %c0_2 = arith.constant 0 : index
    %1 = vector.load %arg2[%c0_1, %c0_2] : memref<16x128xbf16, #tpu.memory_space<vmem>>, vector<16x128xbf16>
    %2 = arith.extf %1 : vector<16x128xbf16> to vector<16x128xf32>
    %c0_3 = arith.constant 0 : index
    %c0_4 = arith.constant 0 : index
    %3 = vector.load %arg4[%c0_3, %c0_4] : memref<1x128xf32, #tpu.memory_space<vmem>>, vector<1x128xf32>
    %c0_5 = arith.constant 0 : index
    %c0_6 = arith.constant 0 : index
    %4 = vector.load %arg5[%c0_5, %c0_6] : memref<1x128xf32, #tpu.memory_space<vmem>>, vector<1x128xf32>
    %5 = vector.broadcast %3 : vector<1x128xf32> to vector<16x128xf32>
    %6 = arith.mulf %0, %5 : vector<16x128xf32>
    %cst = arith.constant dense<0.000000e+00> : vector<16xf32>
    %7 = vector.multi_reduction <add>, %6, %cst [1] : vector<16x128xf32> to vector<16xf32>
    %8 = vector.shape_cast %7 : vector<16xf32> to vector<16x1xf32>
    %9 = vector.broadcast %8 : vector<16x1xf32> to vector<16x128xf32>
    %10 = vector.broadcast %4 : vector<1x128xf32> to vector<16x128xf32>
    %11 = arith.addf %9, %10 : vector<16x128xf32>
    %cst_7 = arith.constant 0.000000e+00 : f32
    %12 = vector.broadcast %cst_7 : f32 to vector<16x128xf32>
    %13 = arith.cmpf ogt, %11, %12 : vector<16x128xf32>
    %cst_8 = arith.constant 2.000000e-01 : f32
    %14 = vector.broadcast %cst_8 : f32 to vector<16x128xf32>
    %15 = arith.mulf %14, %11 : vector<16x128xf32>
    %16 = arith.select %13, %11, %15 : vector<16x128xi1>, vector<16x128xf32>
    %cst_9 = arith.constant 0.000000e+00 : f32
    %17 = vector.broadcast %cst_9 : f32 to vector<16x128xf32>
    %18 = arith.cmpf ogt, %2, %17 : vector<16x128xf32>
    %cst_10 = arith.constant -9.000000e+15 : f32
    %19 = vector.broadcast %cst_10 : f32 to vector<16x128xf32>
    %20 = arith.select %18, %16, %19 : vector<16x128xi1>, vector<16x128xf32>
    %cst_11 = arith.constant dense<0xFF800000> : vector<16xf32>
    %21 = vector.multi_reduction <maximumf>, %20, %cst_11 [1] : vector<16x128xf32> to vector<16xf32>
    %22 = vector.shape_cast %21 : vector<16xf32> to vector<16x1xf32>
    %23 = vector.broadcast %22 : vector<16x1xf32> to vector<16x128xf32>
    %24 = arith.subf %20, %23 : vector<16x128xf32>
    %25 = math.exp %24 : vector<16x128xf32>
    %cst_12 = arith.constant dense<0.000000e+00> : vector<16xf32>
    %26 = vector.multi_reduction <add>, %25, %cst_12 [1] : vector<16x128xf32> to vector<16xf32>
    %27 = vector.shape_cast %26 : vector<16xf32> to vector<16x1xf32>
    %cst_13 = arith.constant dense<0.000000e+00> : vector<16xf32>
    %28 = vector.multi_reduction <add>, %2, %cst_13 [1] : vector<16x128xf32> to vector<16xf32>
    %29 = vector.shape_cast %28 : vector<16xf32> to vector<16x1xf32>
    %cst_14 = arith.constant 1.000000e-01 : f32
    %30 = vector.broadcast %cst_14 : f32 to vector<16x1xf32>
    %31 = arith.mulf %30, %29 : vector<16x1xf32>
    %32 = tpu.reciprocal %27 {approx = true} : vector<16x1xf32> -> vector<16x1xf32>
    %33 = arith.mulf %31, %32 : vector<16x1xf32>
    %34 = vector.broadcast %33 : vector<16x1xf32> to vector<16x128xf32>
    %35 = arith.mulf %25, %34 : vector<16x128xf32>
    %cst_15 = arith.constant 0.899999976 : f32
    %36 = vector.broadcast %cst_15 : f32 to vector<16x128xf32>
    %37 = arith.mulf %2, %36 : vector<16x128xf32>
    %38 = arith.addf %35, %37 : vector<16x128xf32>
    %c0_16 = arith.constant 0 : index
    %c0_17 = arith.constant 0 : index
    %39 = vector.load %arg3[%c0_16, %c0_17] : memref<128x128xf32, #tpu.memory_space<vmem>>, vector<128x128xf32>
    %cst_18 = arith.constant dense<0.000000e+00> : vector<16x128xf32>
    %40 = tpu.matmul %38, %39, %cst_18 {dimension_numbers = #tpu.dot_dimension_numbers<[1], [0], [0], [1], [0, 0, 1, 1], [], []>} : vector<16x128xf32>, vector<128x128xf32>, vector<16x128xf32> -> vector<16x128xf32>
    %c0_19 = arith.constant 0 : index
    %c0_20 = arith.constant 0 : index
    %41 = vector.load %arg6[%c0_19, %c0_20] : memref<16x128xf32, #tpu.memory_space<vmem>>, vector<16x128xf32>
    tpu.vector_store %arg6[%c0_19, %c0_20], %40 {strides = array<i32>} : memref<16x128xf32, #tpu.memory_space<vmem>>, vector<16x128xf32>,
    return
  }
  func.func @transform_0(%arg0: i32) -> (i32, i32) {
    %c0_i32 = arith.constant 0 : i32
    %c0_i32_0 = arith.constant 0 : i32
    return %arg0, %c0_i32 : i32, i32
  }
  func.func @transform_1(%arg0: i32) -> (i32, i32) {
    %c0_i32 = arith.constant 0 : i32
    %c0_i32_0 = arith.constant 0 : i32
    return %arg0, %c0_i32 : i32, i32
  }
  func.func @transform_2(%arg0: i32) -> (i32, i32) {
    %c0_i32 = arith.constant 0 : i32
    %c0_i32_0 = arith.constant 0 : i32
    %c0_i32_1 = arith.constant 0 : i32
    return %c0_i32, %c0_i32_0 : i32, i32
  }
  func.func @transform_3(%arg0: i32) -> (i32, i32) {
    %c0_i32 = arith.constant 0 : i32
    %c0_i32_0 = arith.constant 0 : i32
    %c0_i32_1 = arith.constant 0 : i32
    return %c0_i32, %c0_i32_0 : i32, i32
  }
  func.func @transform_4(%arg0: i32) -> (i32, i32) {
    %c0_i32 = arith.constant 0 : i32
    %c0_i32_0 = arith.constant 0 : i32
    %c0_i32_1 = arith.constant 0 : i32
    return %c0_i32, %c0_i32_0 : i32, i32
  }
  func.func @transform_5(%arg0: i32) -> (i32, i32) {
    %c0_i32 = arith.constant 0 : i32
    %c0_i32_0 = arith.constant 0 : i32
    return %arg0, %c0_i32 : i32, i32
  }
}

</mosaic_0001>

<llo_original>
// kernel: tpu_custom_call.1
$region0: #{tpu_custom_call.1}
  #allocation0 [shape = 'u32[]', space=smem, size = 0x4, offset = 0x4, fixed_abs, tag = 'smem constant byte address 0x4 - core index']
  #allocation1 [shape = 'u32[144,128]{1,0:T(1,128)}', space=vmem, size = 0x12000, scoped, tag = 'internal scratch']
  %s0 = inlined_call_operand.hbm [shape: f32[16,128], index: 0, kind: input, shape index: {}]
  %s1 = inlined_call_operand.hbm [shape: bf16[16,128], index: 1, kind: input, shape index: {}]
  %s2 = inlined_call_operand.hbm [shape: f32[128,128], index: 2, kind: input, shape index: {}]
  %s3 = inlined_call_operand.vmem [shape: f32[1,128], index: 3, kind: input, shape index: {}]
  %s4 = inlined_call_operand.vmem [shape: f32[1,128], index: 4, kind: input, shape index: {}]
  %s5 = inlined_call_operand.hbm [shape: f32[16,128], index: 5, kind: output, shape index: {}]
  %s6 = sld [smem:[#allocation0]]
  $region42: #{tpu_custom_call.1} parent=0
    _
  %s8 = ssub.s32 1, %s6
  %s9 = scalar_select 0, %s8, %s6
  $region1: #{tpu_custom_call.1} parent=0
    #allocation2 [shape = 'u8[8192]{0}', space=vmem, size = 0x2000, scoped, tag = 'input window, operand 0, single buffered']
    #allocation3 [shape = 's32[1]{0}', space=sflag, size = 0x4, scoped, tag = 'scoped memory for tpu_custom_call.1']
    #allocation4 [shape = 's32[1]{0}', space=sflag, size = 0x4, scoped, tag = 'scoped memory for tpu_custom_call.1']
    #allocation5 [shape = 'u8[4096]{0}', space=vmem, size = 0x1000, scoped, tag = 'input window, operand 1, single buffered']
    #allocation6 [shape = 's32[1]{0}', space=sflag, size = 0x4, scoped, tag = 'scoped memory for tpu_custom_call.1']
    #allocation7 [shape = 'u8[65536]{0}', space=vmem, size = 0x10000, scoped, tag = 'input window, operand 2, single buffered']
    #allocation8 [shape = 'u8[8192]{0}', space=vmem, size = 0x2000, scoped, tag = 'output window, operand 0, single buffered']
    %10 = vsyncpa [#allocation3], 0
    %11 = vsyncpa [#allocation6], 0
    %12 = vsyncpa [#allocation4], 0
    // Predicated region
    $region2: #{tpu_custom_call.1} parent=1 // pred_check
      _
    $region3: #{tpu_custom_call.1} parent=1 // pred_check_branch
      %14 = sbr.rel (0) target = $region5
    $region4: #{tpu_custom_call.1} parent=1 // pred_region
      %s16 = ssub.s32 256, 256
      %17 = vsyncadd [#allocation3], %s16
      %s18 = sshll.u32 [#allocation2], 4
      %s19 = int_to_ptr.vmem [resolvable:$true] %s18
      %24 = dma.hbm_to_vmem [thread:$0]  %s0, 256, %s19, [#allocation3], 128, 128, 8
    $region5: #{tpu_custom_call.1} parent=1 // pred_fallthru
      _
    // Predicated region
    $region6: #{tpu_custom_call.1} parent=1 // pred_check
      _
    $region7: #{tpu_custom_call.1} parent=1 // pred_check_branch
      %26 = sbr.rel (0) target = $region9
    $region8: #{tpu_custom_call.1} parent=1 // pred_region
      %s28 = ssub.s32 128, 128
      %29 = vsyncadd [#allocation6], %s28
      %s30 = sshll.u32 [#allocation5], 4
      %s31 = int_to_ptr.vmem [resolvable:$true] %s30
      %36 = dma.hbm_to_vmem [thread:$0]  %s1, 128, %s31, [#allocation6], 64, 64, 4
    $region9: #{tpu_custom_call.1} parent=1 // pred_fallthru
      _
    // Predicated region
    $region10: #{tpu_custom_call.1} parent=1 // pred_check
      _
    $region11: #{tpu_custom_call.1} parent=1 // pred_check_branch
      %38 = sbr.rel (0) target = $region13
    $region12: #{tpu_custom_call.1} parent=1 // pred_region
      %s40 = ssub.s32 2048, 2048
      %41 = vsyncadd [#allocation6], %s40
      %s42 = sshll.u32 [#allocation7], 4
      %s43 = int_to_ptr.vmem [resolvable:$true] %s42
      %48 = dma.hbm_to_vmem [thread:$0]  %s2, 2048, %s43, [#allocation6], 128, 128, 8
    $region13: #{tpu_custom_call.1} parent=1 // pred_fallthru
      _
    // Predicated region
    $region14: #{tpu_custom_call.1} parent=1 // pred_check
      _
    $region15: #{tpu_custom_call.1} parent=1 // pred_check_branch
      %50 = sbr.rel (0) target = $region17
    $region16: #{tpu_custom_call.1} parent=1 // pred_region
      _
    $region17: #{tpu_custom_call.1} parent=1 // pred_fallthru
      _
    // Predicated region
    $region18: #{tpu_custom_call.1} parent=1 // pred_check
      _
    $region19: #{tpu_custom_call.1} parent=1 // pred_check_branch
      %52 = sbr.rel (0) target = $region21
    $region20: #{tpu_custom_call.1} parent=1 // pred_region
      _
    $region21: #{tpu_custom_call.1} parent=1 // pred_fallthru
      _
    // Predicated region
    $region22: #{tpu_custom_call.1} parent=1 // pred_check
      _
    $region23: #{tpu_custom_call.1} parent=1 // pred_check_branch
      %54 = sbr.rel (0) target = $region25
    $region24: #{tpu_custom_call.1} parent=1 // pred_region
      %55 = dma.done [#allocation3], 256
    $region25: #{tpu_custom_call.1} parent=1 // pred_fallthru
      _
    // Predicated region
    $region26: #{tpu_custom_call.1} parent=1 // pred_check
      _
    $region27: #{tpu_custom_call.1} parent=1 // pred_check_branch
      %57 = sbr.rel (0) target = $region29
    $region28: #{tpu_custom_call.1} parent=1 // pred_region
      %58 = dma.done [#allocation6], 128
    $region29: #{tpu_custom_call.1} parent=1 // pred_fallthru
      _
    // Predicated region
    $region30: #{tpu_custom_call.1} parent=1 // pred_check
      _
    $region31: #{tpu_custom_call.1} parent=1 // pred_check_branch
      %60 = sbr.rel (0) target = $region33
    $region32: #{tpu_custom_call.1} parent=1 // pred_region
      %61 = dma.done [#allocation6], 2048
    $region33: #{tpu_custom_call.1} parent=1 // pred_fallthru
      _
    %v62 = vld [vmem:[#allocation2] sm:$0xff]
    %v63 = vld [vmem:[#allocation2 + $0x8] sm:$0xff]
    %v64 = vld [vmem:[#allocation5] sm:$0xf]
    %v65 = vld [vmem:[#allocation5 + $0x4] sm:$0xf]
    %v66 = vunpack.c.l.bf16 %v64
    %v67 = vunpack.c.l.bf16 %v65
    %v68 = vld [vmem:[%s3] sm:$0x1]
    %v69 = vld [vmem:[%s4] sm:$0x1]
    %v71 = vlaneseq
    %v72 = vshrl.u32 %v71, 7
    %v73 = vsub.s32 0, %v72
    %v74 = vrot.slane %v68, %v73
    %v76 = vmul.f32 %v62, %v74
    %v77 = vmul.f32 %v63, %v74
    %78 = vadd.xlane.f32.xlu0 %v76
    %v79 = vpop.xlane.xlu0 %78
    %80 = vadd.xlane.f32.xlu0 %v77
    %v81 = vpop.xlane.xlu0 %80
    %v83 = vlaneseq
    %v84 = vshrl.u32 %v83, 7
    %v85 = vsub.s32 0, %v84
    %v86 = vrot.slane %v69, %v85
    %v88 = vadd.f32 %v79, %v86
    %v89 = vadd.f32 %v81, %v86
    %vm90 = vcmp.gt.f32.partialorder %v88, 0.0
    %vm91 = vcmp.gt.f32.partialorder %v89, 0.0
    %v92 = vmul.f32 %v88, 0.2
    %v93 = vmul.f32 %v89, 0.2
    %v94 = vsel %vm90, %v88, %v92
    %v95 = vsel %vm91, %v89, %v93
    %vm96 = vcmp.gt.f32.partialorder %v66, 0.0
    %vm97 = vcmp.gt.f32.partialorder %v67, 0.0
    %v98 = vsel %vm96, %v94, -9e+15
    %v99 = vsel %vm97, %v95, -9e+15
    %100 = vmax.xlane.f32.xlu0 %v98
    %v101 = vpop.xlane.xlu0 %100
    %102 = vmax.xlane.f32.xlu0 %v99
    %v103 = vpop.xlane.xlu0 %102
    %v104 = vsub.f32 %v98, %v101
    %v105 = vsub.f32 %v99, %v103
    %v106 = vmul.f32 %v104, 1.442695
    %v107 = vpow.pop %v106
    %v108 = vmul.f32 %v105, 1.442695
    %v109 = vpow.pop %v108
    %110 = vadd.xlane.f32.xlu0 %v107
    %v111 = vpop.xlane.xlu0 %110
    %112 = vadd.xlane.f32.xlu0 %v109
    %v113 = vpop.xlane.xlu0 %112
    %114 = vadd.xlane.f32.xlu0 %v66
    %v115 = vpop.xlane.xlu0 %114
    %116 = vadd.xlane.f32.xlu0 %v67
    %v117 = vpop.xlane.xlu0 %116
    %v118 = vmul.f32 %v115, 0.1
    %v119 = vmul.f32 %v117, 0.1
    %v120 = vrcp.pop %v111
    %v121 = vrcp.pop %v113
    %v122 = vmul.f32 %v118, %v120
    %v123 = vmul.f32 %v119, %v121
    %v124 = vmul.f32 %v107, %v122
    %v125 = vmul.f32 %v109, %v123
    %v126 = vmul.f32 %v66, 0.9
    %v127 = vmul.f32 %v67, 0.9
    %v128 = vadd.f32 %v124, %v126
    %v129 = vadd.f32 %v125, %v127
    %v130 = vld [vmem:[#allocation7] sm:$0xff]
    %v131 = vld [vmem:[#allocation7 + $0x8] sm:$0xff]
    %v132 = vld [vmem:[#allocation7 + $0x10] sm:$0xff]
    %v133 = vld [vmem:[#allocation7 + $0x18] sm:$0xff]
    %v134 = vld [vmem:[#allocation7 + $0x20] sm:$0xff]
    %v135 = vld [vmem:[#allocation7 + $0x28] sm:$0xff]
    %v136 = vld [vmem:[#allocation7 + $0x30] sm:$0xff]
    %v137 = vld [vmem:[#allocation7 + $0x38] sm:$0xff]
    %v138 = vld [vmem:[#allocation7 + $0x40] sm:$0xff]
    %v139 = vld [vmem:[#allocation7 + $0x48] sm:$0xff]
    %v140 = vld [vmem:[#allocation7 + $0x50] sm:$0xff]
    %v141 = vld [vmem:[#allocation7 + $0x58] sm:$0xff]
    %v142 = vld [vmem:[#allocation7 + $0x60] sm:$0xff]
    %v143 = vld [vmem:[#allocation7 + $0x68] sm:$0xff]
    %v144 = vld [vmem:[#allocation7 + $0x70] sm:$0xff]
    %v145 = vld [vmem:[#allocation7 + $0x78] sm:$0xff]
    %146 = vmatprep.subr.mxu0 0.0
    %147 = vmatpush1.msra.mxu0 %v145
    %148 = vmatprep.subr.mxu0 0.0
    %149 = vmatpush1.msra.mxu0 %v144
    %150 = vmatprep.subr.mxu0 0.0
    %151 = vmatpush1.msra.mxu0 %v143
    %152 = vmatprep.subr.mxu0 0.0
    %153 = vmatpush1.msra.mxu0 %v142
    %154 = vmatprep.subr.mxu0 0.0
    %155 = vmatpush1.msra.mxu0 %v141
    %156 = vmatprep.subr.mxu0 0.0
    %157 = vmatpush1.msra.mxu0 %v140
    %158 = vmatprep.subr.mxu0 0.0
    %159 = vmatpush1.msra.mxu0 %v139
    %160 = vmatprep.subr.mxu0 0.0
    %161 = vmatpush1.msra.mxu0 %v138
    %162 = vmatprep.subr.mxu0 0.0
    %163 = vmatpush1.msra.mxu0 %v137
    %164 = vmatprep.subr.mxu0 0.0
    %165 = vmatpush1.msra.mxu0 %v136
    %166 = vmatprep.subr.mxu0 0.0
    %167 = vmatpush1.msra.mxu0 %v135
    %168 = vmatprep.subr.mxu0 0.0
    %169 = vmatpush1.msra.mxu0 %v134
    %170 = vmatprep.subr.mxu0 0.0
    %171 = vmatpush1.msra.mxu0 %v133
    %172 = vmatprep.subr.mxu0 0.0
    %173 = vmatpush1.msra.mxu0 %v132
    %174 = vmatprep.subr.mxu0 0.0
    %175 = vmatpush1.msra.mxu0 %v131
    %176 = vmatprep.subr.mxu0 0.0
    %177 = vmatpush1.msra.mxu0 %v130
    %178 = vmatprep.subr.mxu0 0.0
    %179 = vmatpush2.msra.mxu0 0.0
    %180 = vmatprep.subr.mxu0 0.0
    %181 = vmatpush2.msra.mxu0 0.0
    %182 = vmatprep.subr.mxu0 0.0
    %183 = vmatpush2.msra.mxu0 0.0
    %184 = vmatprep.subr.mxu0 0.0
    %185 = vmatpush2.msra.mxu0 0.0
    %186 = vmatprep.subr.mxu0 0.0
    %187 = vmatpush2.msra.mxu0 0.0
    %188 = vmatprep.subr.mxu0 0.0
    %189 = vmatpush2.msra.mxu0 0.0
    %190 = vmatprep.subr.mxu0 0.0
    %191 = vmatpush2.msra.mxu0 0.0
    %192 = vmatprep.subr.mxu0 0.0
    %193 = vmatpush2.msra.mxu0 0.0
    %194 = vmatprep.subr.mxu0 0.0
    %195 = vmatpush2.msra.mxu0 0.0
    %196 = vmatprep.subr.mxu0 0.0
    %197 = vmatpush2.msra.mxu0 0.0
    %198 = vmatprep.subr.mxu0 0.0
    %199 = vmatpush2.msra.mxu0 0.0
    %200 = vmatprep.subr.mxu0 0.0
    %201 = vmatpush2.msra.mxu0 0.0
    %202 = vmatprep.subr.mxu0 0.0
    %203 = vmatpush2.msra.mxu0 0.0
    %204 = vmatprep.subr.mxu0 0.0
    %205 = vmatpush2.msra.mxu0 0.0
    %206 = vmatprep.subr.mxu0 0.0
    %207 = vmatpush2.msra.mxu0 0.0
    %208 = vmatprep.subr.mxu0 0.0
    %209 = vmatpush2.msra.mxu0 0.0
    %210 = vmatprep.mubr.f32.mxu0 0.0
    %211 = vmatmul.mubr.f32.gmra.mxu0 %v128
    %v212 = vpop.f32.mrf.mxu0
    %v213 = vadd.f32 0.0, %v212
    %v214 = vpop.f32.mrf.mxu0
    %215 = vmatprep.mubr.f32.mxu0 0.0
    %216 = vmatmul.mubr.f32.gmra.mxu0 %v129
    %v217 = vpop.f32.mrf.mxu0
    %v218 = vadd.f32 0.0, %v217
    %v219 = vpop.f32.mrf.mxu0
    %220 = vdwg.mxu0
    %221 = vst [vmem:[#allocation8] sm:$0xff] %v213
    %222 = vst [vmem:[#allocation8 + $0x8] sm:$0xff] %v218
    // Predicated region
    $region34: #{tpu_custom_call.1} parent=1 // pred_check
      _
    $region35: #{tpu_custom_call.1} parent=1 // pred_check_branch
      %224 = sbr.rel (0) target = $region37
    $region36: #{tpu_custom_call.1} parent=1 // pred_region
      %s226 = ssub.s32 256, 256
      %227 = vsyncadd [#allocation4], %s226
      %s228 = sshll.u32 [#allocation8], 4
      %s229 = int_to_ptr.vmem [resolvable:$true] %s228
      %234 = dma.vmem_to_hbm [thread:$0]  %s229, 256, %s5, [#allocation4], 128, 128, 8
    $region37: #{tpu_custom_call.1} parent=1 // pred_fallthru
      _
    // Predicated region
    $region38: #{tpu_custom_call.1} parent=1 // pred_check
      _
    $region39: #{tpu_custom_call.1} parent=1 // pred_check_branch
      %236 = sbr.rel (0) target = $region41
    $region40: #{tpu_custom_call.1} parent=1 // pred_region
      %237 = dma.done [#allocation4], 256
    $region41: #{tpu_custom_call.1} parent=1 // pred_fallthru
      _
    %238 = vsyncpa [#allocation3], 1
    %239 = vsyncpa [#allocation6], 1
    %240 = vsyncpa [#allocation4], 1

</llo_original>
